<compile_context>
chip_gen: v7x
topology: tpu7x:2x2x1
jax: 0.10.0
libtpu: 0.0.40
codegen_flags: <defaults>
</compile_context>

<pallas_src>
import jax
import jax.numpy as jnp
import numpy as np
from jax.experimental import pallas as pl
from jax.experimental.pallas import tpu as pltpu


def _round_up(v, m):
    return ((v + m - 1) // m) * m


def matmul_bias_kernel(xcol_ref, w_ref, b_ref, o_ref):
    """One MXU matmul + one broadcast bias add.

    xcol_ref: (K_p, M_p)   VMEM f32   (im2col slab, zero-padded)
    w_ref:    (C_p, K_p)   VMEM f32   (flattened OIHW weights, zero-padded)
    b_ref:    (C_p, 1)     VMEM f32
    o_ref:    (C_p, M_p)   VMEM f32   (lane-dense, 128-aligned output slab)
    """
    acc = jnp.dot(
        w_ref[...],
        xcol_ref[...],
        preferred_element_type=jnp.float32,
        precision=jax.lax.Precision.HIGHEST,  # needed for the 1e-4 check; negligible here
    )
    o_ref[...] = (acc + b_ref[...]).astype(o_ref.dtype)


@jax.jit
def conv2d_pallas(x, w, b):
    """x: (N, C_in, H, W) f32; w: (C_out, C_in, KH, KW) f32; b: (C_out,) f32."""
    N, C_in, H, W = x.shape
    C_out, C_in_w, KH, KW = w.shape
    assert C_in == C_in_w
    OH, OW = H - KH + 1, W - KW + 1

    K = C_in * KH * KW          # 27
    M = N * OH * OW             # 392
    K_p = _round_up(K, 8)       # 32  (sublane-aligned contraction dim)
    M_p = _round_up(M, 128)     # 512 (lane-dense output, no masked-store tail)
    C_p = _round_up(C_out, 8)   # 8

    # ---- im2col in the wrapper (plain JAX / XLA, layout plumbing only) ------
    # Row index r = ci*KH*KW + kh*KW + kw  (matches row-major flatten of OIHW
    # weights); column index = n*OH*OW + oh*OW + ow.
    taps = [
        x[:, ci, kh:kh + OH, kw:kw + OW]
        for ci in range(C_in)
        for kh in range(KH)
        for kw in range(KW)
    ]
    x_col = jnp.stack(taps, axis=0).reshape(K, M)           # (27, 392)

    # Zero-pad everything to the hardware-aligned shapes.
    x_col_p = jnp.pad(x_col, ((0, K_p - K), (0, M_p - M)))  # (32, 512)
    w_p = jnp.pad(w.reshape(C_out, K), ((0, C_p - C_out), (0, K_p - K)))  # (8, 32)
    b_p = jnp.pad(b.reshape(C_out, 1), ((0, C_p - C_out), (0, 0)))        # (8, 1)

    bytes_accessed = 4 * (K_p * M_p + C_p * K_p + C_p + C_p * M_p)
    out_p = pl.pallas_call(
        matmul_bias_kernel,
        out_shape=jax.ShapeDtypeStruct((C_p, M_p), x.dtype),
        # Gridless: the whole padded problem is one VMEM-resident block.
        in_specs=[
            pl.BlockSpec(memory_space=pltpu.MemorySpace.VMEM),  # x_col
            pl.BlockSpec(memory_space=pltpu.MemorySpace.VMEM),  # weights
            pl.BlockSpec(memory_space=pltpu.MemorySpace.VMEM),  # bias
        ],
        out_specs=pl.BlockSpec(memory_space=pltpu.MemorySpace.VMEM),
        cost_estimate=pl.CostEstimate(
            flops=2 * C_p * K_p * M_p,
            bytes_accessed=bytes_accessed,
            transcendentals=0,
        ),
    )(x_col_p, w_p, b_p)

    # Strip the padding and restore NCHW (matches PyTorch Conv2d output).
    out = out_p[:C_out, :M]
    return out.reshape(C_out, N, OH, OW).transpose(1, 0, 2, 3)


if __name__ == "__main__":
    key = jax.random.PRNGKey(0)
    kx, kw_, kb = jax.random.split(key, 3)

    N, C_in, H, W = 2, 3, 16, 16
    C_out, KH, KW = 6, 3, 3

    x = jax.random.normal(kx, (N, C_in, H, W), dtype=jnp.float32)

    # Deterministic parameter init mimicking PyTorch Conv2d default
    # (uniform in [-1/sqrt(fan_in), 1/sqrt(fan_in)], fan_in = C_in*KH*KW = 27).
    bound = 1.0 / np.sqrt(C_in * KH * KW)
    w = jax.random.uniform(kw_, (C_out, C_in, KH, KW), jnp.float32, -bound, bound)
    b = jax.random.uniform(kb, (C_out,), jnp.float32, -bound, bound)

    out = jax.block_until_ready(conv2d_pallas(x, w, b))

    # Reference check against XLA's conv (same NCHW / OIHW conventions as PyTorch).
    ref = jax.lax.conv_general_dilated(
        x, w, window_strides=(1, 1), padding="VALID",
        dimension_numbers=("NCHW", "OIHW", "NCHW"),
        precision=jax.lax.Precision.HIGHEST,
    ) + b.reshape(1, C_out, 1, 1)

    assert out.shape == (N, C_out, H - KH + 1, W - KW + 1)
    np.testing.assert_allclose(np.asarray(out), np.asarray(ref), rtol=1e-4, atol=1e-4)

    print("KERNEL_OK")
</pallas_src>

<mosaic_0001>
module attributes {stable_mosaic.version = 11 : i64} {
  func.func @matmul_bias_kernel(%arg0: memref<32x512xf32, #tpu.memory_space<vmem>>, %arg1: memref<8x32xf32, #tpu.memory_space<vmem>>, %arg2: memref<8x1xf32, #tpu.memory_space<vmem>>, %arg3: memref<8x512xf32, #tpu.memory_space<vmem>>) attributes {dimension_semantics = [], scalar_prefetch = 0 : i64, scratch_operands = 0 : i64, tpu.core_type = #tpu.core_type<tc>} {
    %c0 = arith.constant 0 : index
    %c0_0 = arith.constant 0 : index
    %0 = vector.load %arg1[%c0, %c0_0] : memref<8x32xf32, #tpu.memory_space<vmem>>, vector<8x32xf32>
    %c0_1 = arith.constant 0 : index
    %c0_2 = arith.constant 0 : index
    %1 = vector.load %arg0[%c0_1, %c0_2] : memref<32x512xf32, #tpu.memory_space<vmem>>, vector<32x512xf32>
    %cst = arith.constant dense<0.000000e+00> : vector<8x512xf32>
    %2 = tpu.matmul %0, %1, %cst {dimension_numbers = #tpu.dot_dimension_numbers<[1], [0], [0], [1], [0, 0, 1, 1], [], []>, precision = #tpu.contract_precision<fp32>} : vector<8x32xf32>, vector<32x512xf32>, vector<8x512xf32> -> vector<8x512xf32>
    %c0_3 = arith.constant 0 : index
    %c0_4 = arith.constant 0 : index
    %3 = vector.load %arg2[%c0_3, %c0_4] : memref<8x1xf32, #tpu.memory_space<vmem>>, vector<8x1xf32>
    %4 = vector.broadcast %3 : vector<8x1xf32> to vector<8x512xf32>
    %5 = arith.addf %2, %4 : vector<8x512xf32>
    %c0_5 = arith.constant 0 : index
    %c0_6 = arith.constant 0 : index
    %6 = vector.load %arg3[%c0_5, %c0_6] : memref<8x512xf32, #tpu.memory_space<vmem>>, vector<8x512xf32>
    tpu.vector_store %arg3[%c0_5, %c0_6], %5 {strides = array<i32>} : memref<8x512xf32, #tpu.memory_space<vmem>>, vector<8x512xf32>,
    return
  }
}

</mosaic_0001>

<llo_original>
// kernel: conv2d_pallas.1
$region0: #{conv2d_pallas.1}
  #allocation0 [shape = 'u32[]', space=smem, size = 0x4, offset = 0x4, fixed_abs, tag = 'smem constant byte address 0x4 - core index']
  #allocation1 [shape = 'u32[144,128]{1,0:T(1,128)}', space=vmem, size = 0x12000, scoped, tag = 'internal scratch']
  %s0 = inlined_call_operand.vmem [shape: f32[32,512], index: 0, kind: input, shape index: {}]
  %s1 = inlined_call_operand.vmem [shape: f32[8,32], index: 1, kind: input, shape index: {}]
  %s2 = inlined_call_operand.vmem [shape: f32[8,1], index: 2, kind: input, shape index: {}]
  %s3 = inlined_call_operand.vmem [shape: f32[8,512], index: 3, kind: output, shape index: {}]
  %s4 = sld [smem:[#allocation0]]
  $region22: #{conv2d_pallas.1} parent=0
    _
  %s6 = ssub.s32 1, %s4
  %s7 = scalar_select 0, %s6, %s4
  // Predicated region
  $region2: #{conv2d_pallas.1} parent=0 // pred_check
    _
  $region3: #{conv2d_pallas.1} parent=0 // pred_check_branch
    %9 = sbr.rel (0) target = $region5
  $region4: #{conv2d_pallas.1} parent=0 // pred_region
    _
  $region5: #{conv2d_pallas.1} parent=0 // pred_fallthru
    _
  // Predicated region
  $region6: #{conv2d_pallas.1} parent=0 // pred_check
    _
  $region7: #{conv2d_pallas.1} parent=0 // pred_check_branch
    %11 = sbr.rel (0) target = $region9
  $region8: #{conv2d_pallas.1} parent=0 // pred_region
    _
  $region9: #{conv2d_pallas.1} parent=0 // pred_fallthru
    _
  // Predicated region
  $region10: #{conv2d_pallas.1} parent=0 // pred_check
    _
  $region11: #{conv2d_pallas.1} parent=0 // pred_check_branch
    %13 = sbr.rel (0) target = $region13
  $region12: #{conv2d_pallas.1} parent=0 // pred_region
    _
  $region13: #{conv2d_pallas.1} parent=0 // pred_fallthru
    _
  %v14 = vld [vmem:[%s1] sm:$0xff]
  %v15 = vld [vmem:[%s0] sm:$0xff]
  %v16 = vld [vmem:[%s0 + $0x8] sm:$0xff]
  %v17 = vld [vmem:[%s0 + $0x10] sm:$0xff]
  %v18 = vld [vmem:[%s0 + $0x18] sm:$0xff]
  %v19 = vld [vmem:[%s0 + $0x20] sm:$0xff]
  %v20 = vld [vmem:[%s0 + $0x28] sm:$0xff]
  %v21 = vld [vmem:[%s0 + $0x30] sm:$0xff]
  %v22 = vld [vmem:[%s0 + $0x38] sm:$0xff]
  %v23 = vld [vmem:[%s0 + $0x40] sm:$0xff]
  %v24 = vld [vmem:[%s0 + $0x48] sm:$0xff]
  %v25 = vld [vmem:[%s0 + $0x50] sm:$0xff]
  %v26 = vld [vmem:[%s0 + $0x58] sm:$0xff]
  %v27 = vld [vmem:[%s0 + $0x60] sm:$0xff]
  %v28 = vld [vmem:[%s0 + $0x68] sm:$0xff]
  %v29 = vld [vmem:[%s0 + $0x70] sm:$0xff]
  %v30 = vld [vmem:[%s0 + $0x78] sm:$0xff]
  %v31 = vld [vmem:[%s2] sm:$0xff]
  %33 = vset.pattern.permute.xlu0 0
  %34 = vperm.xlu0 %33, %v31
  %v35 = vpop.permute.xlu0 %34
  %vm37 = vcmask 261120
  %v39 = vsel %vm37, %v14, 0
  %v41 = vand.u32 %v16, 4294901760
  %42 = vmatprep.subr.mxu0 %v41
  %v43 = vand.u32 %v15, 4294901760
  %44 = vmatpush1.msra.mxu0 %v43
  %v45 = vand.u32 %v20, 4294901760
  %46 = vmatprep.subr.mxu0 %v45
  %v47 = vand.u32 %v19, 4294901760
  %48 = vmatpush1.msra.mxu0 %v47
  %v49 = vand.u32 %v24, 4294901760
  %50 = vmatprep.subr.mxu0 %v49
  %v51 = vand.u32 %v23, 4294901760
  %52 = vmatpush1.msra.mxu0 %v51
  %v53 = vand.u32 %v28, 4294901760
  %54 = vmatprep.subr.mxu0 %v53
  %v55 = vand.u32 %v27, 4294901760
  %56 = vmatpush1.msra.mxu0 %v55
  %57 = vmatprep.subr.mxu0 0.0
  %58 = vmatpush1.msra.mxu0 0.0
  %59 = vmatprep.subr.mxu0 0.0
  %60 = vmatpush1.msra.mxu0 0.0
  %61 = vmatprep.subr.mxu0 0.0
  %62 = vmatpush1.msra.mxu0 0.0
  %63 = vmatprep.subr.mxu0 0.0
  %64 = vmatpush1.msra.mxu0 0.0
  %65 = vmatprep.subr.mxu0 0.0
  %66 = vmatpush1.msra.mxu0 0.0
  %67 = vmatprep.subr.mxu0 0.0
  %68 = vmatpush1.msra.mxu0 0.0
  %69 = vmatprep.subr.mxu0 0.0
  %70 = vmatpush1.msra.mxu0 0.0
  %71 = vmatprep.subr.mxu0 0.0
  %72 = vmatpush1.msra.mxu0 0.0
  %73 = vmatprep.subr.mxu0 0.0
  %74 = vmatpush1.msra.mxu0 0.0
  %75 = vmatprep.subr.mxu0 0.0
  %76 = vmatpush1.msra.mxu0 0.0
  %77 = vmatprep.subr.mxu0 0.0
  %78 = vmatpush1.msra.mxu0 0.0
  %79 = vmatprep.subr.mxu0 0.0
  %80 = vmatpush1.msra.mxu0 0.0
  %81 = vmatprep.subr.mxu0 0.0
  %82 = vmatpush1.msra.mxu0 0.0
  %83 = vmatprep.subr.mxu0 0.0
  %84 = vmatpush1.msra.mxu0 0.0
  %85 = vmatprep.subr.mxu0 0.0
  %86 = vmatpush1.msra.mxu0 0.0
  %87 = vmatprep.subr.mxu0 0.0
  %88 = vmatpush1.msra.mxu0 0.0
  %89 = vmatprep.subr.mxu0 0.0
  %90 = vmatpush1.msra.mxu0 0.0
  %91 = vmatprep.subr.mxu0 0.0
  %92 = vmatpush1.msra.mxu0 0.0
  %93 = vmatprep.subr.mxu0 0.0
  %94 = vmatpush1.msra.mxu0 0.0
  %95 = vmatprep.subr.mxu0 0.0
  %96 = vmatpush1.msra.mxu0 0.0
  %97 = vmatprep.subr.mxu0 0.0
  %98 = vmatpush1.msra.mxu0 0.0
  %99 = vmatprep.subr.mxu0 0.0
  %100 = vmatpush1.msra.mxu0 0.0
  %101 = vmatprep.subr.mxu0 0.0
  %102 = vmatpush1.msra.mxu0 0.0
  %103 = vmatprep.subr.mxu0 0.0
  %104 = vmatpush1.msra.mxu0 0.0
  %105 = vmatprep.subr.mxu0 0.0
  %106 = vmatpush1.msra.mxu0 0.0
  %107 = vmatprep.subr.mxu0 0.0
  %108 = vmatpush1.msra.mxu0 0.0
  %109 = vmatprep.subr.mxu0 0.0
  %110 = vmatpush1.msra.mxu0 0.0
  %111 = vmatprep.subr.mxu0 0.0
  %112 = vmatpush1.msra.mxu0 0.0
  %113 = vmatprep.mubr.f32.mxu0 0.0
  %v114 = vand.u32 %v39, 4294901760
  %v115 = vsub.f32 %v39, %v114
  %v116 = vand.u32 %v115, 4294901760
  %v117 = vsub.f32 %v115, %v116
  %v118 = vand.u32 %v117, 4294901760
  %119 = vmatmul.mubr.f32.gmra.mrb[0].mxu0 %v118
  %v120 = vpop.f32.mrb[0].mxu0
  %v121 = vadd.f32 %v35, %v120
  %v122 = vpop.f32.mrb[0].mxu0
  %v123 = vadd.f32 %v35, %v122
  %124 = vdwg.mxu0
  %v125 = vand.u32 %v16, 4294901760
  %v126 = vsub.f32 %v16, %v125
  %v127 = vand.u32 %v126, 4294901760
  %v128 = vsub.f32 %v126, %v127
  %v129 = vand.u32 %v128, 4294901760
  %130 = vmatprep.subr.mxu0 %v129
  %v131 = vand.u32 %v15, 4294901760
  %v132 = vsub.f32 %v15, %v131
  %v133 = vand.u32 %v132, 4294901760
  %v134 = vsub.f32 %v132, %v133
  %v135 = vand.u32 %v134, 4294901760
  %136 = vmatpush1.msra.mxu0 %v135
  %v137 = vand.u32 %v20, 4294901760
  %v138 = vsub.f32 %v20, %v137
  %v139 = vand.u32 %v138, 4294901760
  %v140 = vsub.f32 %v138, %v139
  %v141 = vand.u32 %v140, 4294901760
  %142 = vmatprep.subr.mxu0 %v141
  %v143 = vand.u32 %v19, 4294901760
  %v144 = vsub.f32 %v19, %v143
  %v145 = vand.u32 %v144, 4294901760
  %v146 = vsub.f32 %v144, %v145
  %v147 = vand.u32 %v146, 4294901760
  %148 = vmatpush1.msra.mxu0 %v147
  %v149 = vand.u32 %v24, 4294901760
  %v150 = vsub.f32 %v24, %v149
  %v151 = vand.u32 %v150, 4294901760
  %v152 = vsub.f32 %v150, %v151
  %v153 = vand.u32 %v152, 4294901760
  %154 = vmatprep.subr.mxu0 %v153
  %v155 = vand.u32 %v23, 4294901760
  %v156 = vsub.f32 %v23, %v155
  %v157 = vand.u32 %v156, 4294901760
  %v158 = vsub.f32 %v156, %v157
  %v159 = vand.u32 %v158, 4294901760
  %160 = vmatpush1.msra.mxu0 %v159
  %v161 = vand.u32 %v28, 4294901760
  %v162 = vsub.f32 %v28, %v161
  %v163 = vand.u32 %v162, 4294901760
  %v164 = vsub.f32 %v162, %v163
  %v165 = vand.u32 %v164, 4294901760
  %166 = vmatprep.subr.mxu0 %v165
  %v167 = vand.u32 %v27, 4294901760
  %v168 = vsub.f32 %v27, %v167
  %v169 = vand.u32 %v168, 4294901760
  %v170 = vsub.f32 %v168, %v169
  %v171 = vand.u32 %v170, 4294901760
  %172 = vmatpush1.msra.mxu0 %v171
  %173 = vmatprep.subr.mxu0 0.0
  %174 = vmatpush1.msra.mxu0 0.0
  %175 = vmatprep.subr.mxu0 0.0
  %176 = vmatpush1.msra.mxu0 0.0
  %177 = vmatprep.subr.mxu0 0.0
  %178 = vmatpush1.msra.mxu0 0.0
  %179 = vmatprep.subr.mxu0 0.0
  %180 = vmatpush1.msra.mxu0 0.0
  %181 = vmatprep.subr.mxu0 0.0
  %182 = vmatpush1.msra.mxu0 0.0
  %183 = vmatprep.subr.mxu0 0.0
  %184 = vmatpush1.msra.mxu0 0.0
  %185 = vmatprep.subr.mxu0 0.0
  %186 = vmatpush1.msra.mxu0 0.0
  %187 = vmatprep.subr.mxu0 0.0
  %188 = vmatpush1.msra.mxu0 0.0
  %189 = vmatprep.subr.mxu0 0.0
  %190 = vmatpush1.msra.mxu0 0.0
  %191 = vmatprep.subr.mxu0 0.0
  %192 = vmatpush1.msra.mxu0 0.0
  %193 = vmatprep.subr.mxu0 0.0
  %194 = vmatpush1.msra.mxu0 0.0
  %195 = vmatprep.subr.mxu0 0.0
  %196 = vmatpush1.msra.mxu0 0.0
  %197 = vmatprep.subr.mxu0 0.0
  %198 = vmatpush1.msra.mxu0 0.0
  %199 = vmatprep.subr.mxu0 0.0
  %200 = vmatpush1.msra.mxu0 0.0
  %201 = vmatprep.subr.mxu0 0.0
  %202 = vmatpush1.msra.mxu0 0.0
  %203 = vmatprep.subr.mxu0 0.0
  %204 = vmatpush1.msra.mxu0 0.0
  %205 = vmatprep.subr.mxu0 0.0
  %206 = vmatpush1.msra.mxu0 0.0
  %207 = vmatprep.subr.mxu0 0.0
  %208 = vmatpush1.msra.mxu0 0.0
  %209 = vmatprep.subr.mxu0 0.0
  %210 = vmatpush1.msra.mxu0 0.0
  %211 = vmatprep.subr.mxu0 0.0
  %212 = vmatpush1.msra.mxu0 0.0
  %213 = vmatprep.subr.mxu0 0.0
  %214 = vmatpush1.msra.mxu0 0.0
  %215 = vmatprep.subr.mxu0 0.0
  %216 = vmatpush1.msra.mxu0 0.0
  %217 = vmatprep.subr.mxu0 0.0
  %218 = vmatpush1.msra.mxu0 0.0
  %219 = vmatprep.subr.mxu0 0.0
  %220 = vmatpush1.msra.mxu0 0.0
  %221 = vmatprep.subr.mxu0 0.0
  %222 = vmatpush1.msra.mxu0 0.0
  %223 = vmatprep.subr.mxu0 0.0
  %224 = vmatpush1.msra.mxu0 0.0
  %225 = vmatprep.subr.mxu0 0.0
  %226 = vmatpush1.msra.mxu0 0.0
  %227 = vmatprep.subr.mxu0 0.0
  %228 = vmatpush1.msra.mxu0 0.0
  %229 = vmatprep.mubr.f32.mxu0 0.0
  %v230 = vand.u32 %v39, 4294901760
  %231 = vmatmul.mubr.f32.gmra.mrb[0].mxu0 %v230
  %v232 = vpop.f32.mrb[0].mxu0
  %v233 = vadd.f32 %v121, %v232
  %v234 = vpop.f32.mrb[0].mxu0
  %v235 = vadd.f32 %v123, %v234
  %236 = vdwg.mxu0
  %v237 = vand.u32 %v16, 4294901760
  %v238 = vsub.f32 %v16, %v237
  %239 = vmatprep.subr.mxu0 %v238
  %v240 = vand.u32 %v15, 4294901760
  %v241 = vsub.f32 %v15, %v240
  %242 = vmatpush1.msra.mxu0 %v241
  %v243 = vand.u32 %v20, 4294901760
  %v244 = vsub.f32 %v20, %v243
  %245 = vmatprep.subr.mxu0 %v244
  %v246 = vand.u32 %v19, 4294901760
  %v247 = vsub.f32 %v19, %v246
  %248 = vmatpush1.msra.mxu0 %v247
  %v249 = vand.u32 %v24, 4294901760
  %v250 = vsub.f32 %v24, %v249
  %251 = vmatprep.subr.mxu0 %v250
  %v252 = vand.u32 %v23, 4294901760
  %v253 = vsub.f32 %v23, %v252
  %254 = vmatpush1.msra.mxu0 %v253
  %v255 = vand.u32 %v28, 4294901760
  %v256 = vsub.f32 %v28, %v255
  %257 = vmatprep.subr.mxu0 %v256
  %v258 = vand.u32 %v27, 4294901760
  %v259 = vsub.f32 %v27, %v258
  %260 = vmatpush1.msra.mxu0 %v259
  %261 = vmatprep.subr.mxu0 0.0
  %262 = vmatpush1.msra.mxu0 0.0
  %263 = vmatprep.subr.mxu0 0.0
  %264 = vmatpush1.msra.mxu0 0.0
  %265 = vmatprep.subr.mxu0 0.0
  %266 = vmatpush1.msra.mxu0 0.0
  %267 = vmatprep.subr.mxu0 0.0
  %268 = vmatpush1.msra.mxu0 0.0
  %269 = vmatprep.subr.mxu0 0.0
  %270 = vmatpush1.msra.mxu0 0.0
  %271 = vmatprep.subr.mxu0 0.0
  %272 = vmatpush1.msra.mxu0 0.0
  %273 = vmatprep.subr.mxu0 0.0
  %274 = vmatpush1.msra.mxu0 0.0
  %275 = vmatprep.subr.mxu0 0.0
  %276 = vmatpush1.msra.mxu0 0.0
  %277 = vmatprep.subr.mxu0 0.0
  %278 = vmatpush1.msra.mxu0 0.0
  %279 = vmatprep.subr.mxu0 0.0
  %280 = vmatpush1.msra.mxu0 0.0
  %281 = vmatprep.subr.mxu0 0.0
  %282 = vmatpush1.msra.mxu0 0.0
  %283 = vmatprep.subr.mxu0 0.0
  %284 = vmatpush1.msra.mxu0 0.0
  %285 = vmatprep.subr.mxu0 0.0
  %286 = vmatpush1.msra.mxu0 0.0
  %287 = vmatprep.subr.mxu0 0.0
  %288 = vmatpush1.msra.mxu0 0.0
  %289 = vmatprep.subr.mxu0 0.0
  %290 = vmatpush1.msra.mxu0 0.0
  %291 = vmatprep.subr.mxu0 0.0
  %292 = vmatpush1.msra.mxu0 0.0
  %293 = vmatprep.subr.mxu0 0.0
  %294 = vmatpush1.msra.mxu0 0.0
  %295 = vmatprep.subr.mxu0 0.0
  %296 = vmatpush1.msra.mxu0 0.0
  %297 = vmatprep.subr.mxu0 0.0
  %298 = vmatpush1.msra.mxu0 0.0
  %299 = vmatprep.subr.mxu0 0.0
  %300 = vmatpush1.msra.mxu0 0.0
  %301 = vmatprep.subr.mxu0 0.0
  %302 = vmatpush1.msra.mxu0 0.0
  %303 = vmatprep.subr.mxu0 0.0
  %304 = vmatpush1.msra.mxu0 0.0
  %305 = vmatprep.subr.mxu0 0.0
  %306 = vmatpush1.msra.mxu0 0.0
  %307 = vmatprep.subr.mxu0 0.0
  %308 = vmatpush1.msra.mxu0 0.0
  %309 = vmatprep.subr.mxu0 0.0
  %310 = vmatpush1.msra.mxu0 0.0
  %311 = vmatprep.subr.mxu0 0.0
  %312 = vmatpush1.msra.mxu0 0.0
  %313 = vmatprep.subr.mxu0 0.0
  %314 = vmatpush1.msra.mxu0 0.0
  %315 = vmatprep.subr.mxu0 0.0
  %316 = vmatpush1.msra.mxu0 0.0
  %317 = vmatprep.mubr.f32.mxu0 0.0
  %v318 = vand.u32 %v39, 4294901760
  %v319 = vsub.f32 %v39, %v318
  %320 = vmatmul.mubr.f32.gmra.mrb[0].mxu0 %v319
  %v321 = vpop.f32.mrb[0].mxu0
  %v322 = vadd.f32 %v233, %v321
  %v323 = vpop.f32.mrb[0].mxu0
  %v324 = vadd.f32 %v235, %v323
  %325 = vdwg.mxu0
  %v326 = vand.u32 %v16, 4294901760
  %327 = vmatprep.subr.mxu0 %v326
  %v328 = vand.u32 %v15, 4294901760
  %329 = vmatpush1.msra.mxu0 %v328
  %v330 = vand.u32 %v20, 4294901760
  %331 = vmatprep.subr.mxu0 %v330
  %v332 = vand.u32 %v19, 4294901760
  %333 = vmatpush1.msra.mxu0 %v332
  %v334 = vand.u32 %v24, 4294901760
  %335 = vmatprep.subr.mxu0 %v334
  %v336 = vand.u32 %v23, 4294901760
  %337 = vmatpush1.msra.mxu0 %v336
  %v338 = vand.u32 %v28, 4294901760
  %339 = vmatprep.subr.mxu0 %v338
  %v340 = vand.u32 %v27, 4294901760
  %341 = vmatpush1.msra.mxu0 %v340
  %342 = vmatprep.subr.mxu0 0.0
  %343 = vmatpush1.msra.mxu0 0.0
  %344 = vmatprep.subr.mxu0 0.0
  %345 = vmatpush1.msra.mxu0 0.0
  %346 = vmatprep.subr.mxu0 0.0
  %347 = vmatpush1.msra.mxu0 0.0
  %348 = vmatprep.subr.mxu0 0.0
  %349 = vmatpush1.msra.mxu0 0.0
  %350 = vmatprep.subr.mxu0 0.0
  %351 = vmatpush1.msra.mxu0 0.0
  %352 = vmatprep.subr.mxu0 0.0
  %353 = vmatpush1.msra.mxu0 0.0
  %354 = vmatprep.subr.mxu0 0.0
  %355 = vmatpush1.msra.mxu0 0.0
  %356 = vmatprep.subr.mxu0 0.0
  %357 = vmatpush1.msra.mxu0 0.0
  %358 = vmatprep.subr.mxu0 0.0
  %359 = vmatpush1.msra.mxu0 0.0
  %360 = vmatprep.subr.mxu0 0.0
  %361 = vmatpush1.msra.mxu0 0.0
  %362 = vmatprep.subr.mxu0 0.0
  %363 = vmatpush1.msra.mxu0 0.0
  %364 = vmatprep.subr.mxu0 0.0
  %365 = vmatpush1.msra.mxu0 0.0
  %366 = vmatprep.subr.mxu0 0.0
  %367 = vmatpush1.msra.mxu0 0.0
  %368 = vmatprep.subr.mxu0 0.0
  %369 = vmatpush1.msra.mxu0 0.0
  %370 = vmatprep.subr.mxu0 0.0
  %371 = vmatpush1.msra.mxu0 0.0
  %372 = vmatprep.subr.mxu0 0.0
  %373 = vmatpush1.msra.mxu0 0.0
  %374 = vmatprep.subr.mxu0 0.0
  %375 = vmatpush1.msra.mxu0 0.0
  %376 = vmatprep.subr.mxu0 0.0
  %377 = vmatpush1.msra.mxu0 0.0
  %378 = vmatprep.subr.mxu0 0.0
  %379 = vmatpush1.msra.mxu0 0.0
  %380 = vmatprep.subr.mxu0 0.0
  %381 = vmatpush1.msra.mxu0 0.0
  %382 = vmatprep.subr.mxu0 0.0
  %383 = vmatpush1.msra.mxu0 0.0
  %384 = vmatprep.subr.mxu0 0.0
  %385 = vmatpush1.msra.mxu0 0.0
  %386 = vmatprep.subr.mxu0 0.0
  %387 = vmatpush1.msra.mxu0 0.0
  %388 = vmatprep.subr.mxu0 0.0
  %389 = vmatpush1.msra.mxu0 0.0
  %390 = vmatprep.subr.mxu0 0.0
  %391 = vmatpush1.msra.mxu0 0.0
  %392 = vmatprep.subr.mxu0 0.0
  %393 = vmatpush1.msra.mxu0 0.0
  %394 = vmatprep.subr.mxu0 0.0
  %395 = vmatpush1.msra.mxu0 0.0
  %396 = vmatprep.subr.mxu0 0.0
  %397 = vmatpush1.msra.mxu0 0.0
  %398 = vmatprep.mubr.f32.mxu0 0.0
  %v399 = vand.u32 %v39, 4294901760
  %v400 = vsub.f32 %v39, %v399
  %v401 = vand.u32 %v400, 4294901760
  %402 = vmatmul.mubr.f32.gmra.mrb[0].mxu0 %v401
  %v403 = vpop.f32.mrb[0].mxu0
  %v404 = vadd.f32 %v322, %v403
  %v405 = vpop.f32.mrb[0].mxu0
  %v406 = vadd.f32 %v324, %v405
  %407 = vdwg.mxu0
  %v408 = vand.u32 %v16, 4294901760
  %v409 = vsub.f32 %v16, %v408
  %v410 = vand.u32 %v409, 4294901760
  %411 = vmatprep.subr.mxu0 %v410
  %v412 = vand.u32 %v15, 4294901760
  %v413 = vsub.f32 %v15, %v412
  %v414 = vand.u32 %v413, 4294901760
  %415 = vmatpush1.msra.mxu0 %v414
  %v416 = vand.u32 %v20, 4294901760
  %v417 = vsub.f32 %v20, %v416
  %v418 = vand.u32 %v417, 4294901760
  %419 = vmatprep.subr.mxu0 %v418
  %v420 = vand.u32 %v19, 4294901760
  %v421 = vsub.f32 %v19, %v420
  %v422 = vand.u32 %v421, 4294901760
  %423 = vmatpush1.msra.mxu0 %v422
  %v424 = vand.u32 %v24, 4294901760
  %v425 = vsub.f32 %v24, %v424
  %v426 = vand.u32 %v425, 4294901760
  %427 = vmatprep.subr.mxu0 %v426
  %v428 = vand.u32 %v23, 4294901760
  %v429 = vsub.f32 %v23, %v428
  %v430 = vand.u32 %v429, 4294901760
  %431 = vmatpush1.msra.mxu0 %v430
  %v432 = vand.u32 %v28, 4294901760
  %v433 = vsub.f32 %v28, %v432
  %v434 = vand.u32 %v433, 4294901760
  %435 = vmatprep.subr.mxu0 %v434
  %v436 = vand.u32 %v27, 4294901760
  %v437 = vsub.f32 %v27, %v436
  %v438 = vand.u32 %v437, 4294901760
  %439 = vmatpush1.msra.mxu0 %v438
  %440 = vmatprep.subr.mxu0 0.0
  %441 = vmatpush1.msra.mxu0 0.0
  %442 = vmatprep.subr.mxu0 0.0
  %443 = vmatpush1.msra.mxu0 0.0
  %444 = vmatprep.subr.mxu0 0.0
  %445 = vmatpush1.msra.mxu0 0.0
  %446 = vmatprep.subr.mxu0 0.0
  %447 = vmatpush1.msra.mxu0 0.0
  %448 = vmatprep.subr.mxu0 0.0
  %449 = vmatpush1.msra.mxu0 0.0
  %450 = vmatprep.subr.mxu0 0.0
  %451 = vmatpush1.msra.mxu0 0.0
  %452 = vmatprep.subr.mxu0 0.0
  %453 = vmatpush1.msra.mxu0 0.0
  %454 = vmatprep.subr.mxu0 0.0
  %455 = vmatpush1.msra.mxu0 0.0
  %456 = vmatprep.subr.mxu0 0.0
  %457 = vmatpush1.msra.mxu0 0.0
  %458 = vmatprep.subr.mxu0 0.0
  %459 = vmatpush1.msra.mxu0 0.0
  %460 = vmatprep.subr.mxu0 0.0
  %461 = vmatpush1.msra.mxu0 0.0
  %462 = vmatprep.subr.mxu0 0.0
  %463 = vmatpush1.msra.mxu0 0.0
  %464 = vmatprep.subr.mxu0 0.0
  %465 = vmatpush1.msra.mxu0 0.0
  %466 = vmatprep.subr.mxu0 0.0
  %467 = vmatpush1.msra.mxu0 0.0
  %468 = vmatprep.subr.mxu0 0.0
  %469 = vmatpush1.msra.mxu0 0.0
  %470 = vmatprep.subr.mxu0 0.0
  %471 = vmatpush1.msra.mxu0 0.0
  %472 = vmatprep.subr.mxu0 0.0
  %473 = vmatpush1.msra.mxu0 0.0
  %474 = vmatprep.subr.mxu0 0.0
  %475 = vmatpush1.msra.mxu0 0.0
  %476 = vmatprep.subr.mxu0 0.0
  %477 = vmatpush1.msra.mxu0 0.0
  %478 = vmatprep.subr.mxu0 0.0
  %479 = vmatpush1.msra.mxu0 0.0
  %480 = vmatprep.subr.mxu0 0.0
  %481 = vmatpush1.msra.mxu0 0.0
  %482 = vmatprep.subr.mxu0 0.0
  %483 = vmatpush1.msra.mxu0 0.0
  %484 = vmatprep.subr.mxu0 0.0
  %485 = vmatpush1.msra.mxu0 0.0
  %486 = vmatprep.subr.mxu0 0.0
  %487 = vmatpush1.msra.mxu0 0.0
  %488 = vmatprep.subr.mxu0 0.0
  %489 = vmatpush1.msra.mxu0 0.0
  %490 = vmatprep.subr.mxu0 0.0
  %491 = vmatpush1.msra.mxu0 0.0
  %492 = vmatprep.subr.mxu0 0.0
  %493 = vmatpush1.msra.mxu0 0.0
  %494 = vmatprep.subr.mxu0 0.0
  %495 = vmatpush1.msra.mxu0 0.0
  %496 = vmatprep.mubr.f32.mxu0 0.0
  %v497 = vand.u32 %v39, 4294901760
  %498 = vmatmul.mubr.f32.gmra.mrb[0].mxu0 %v497
  %v499 = vpop.f32.mrb[0].mxu0
  %v500 = vadd.f32 %v404, %v499
  %v501 = vpop.f32.mrb[0].mxu0
  %v502 = vadd.f32 %v406, %v501
  %503 = vdwg.mxu0
  %v504 = vand.u32 %v16, 4294901760
  %505 = vmatprep.subr.mxu0 %v504
  %v506 = vand.u32 %v15, 4294901760
  %507 = vmatpush1.msra.mxu0 %v506
  %v508 = vand.u32 %v20, 4294901760
  %509 = vmatprep.subr.mxu0 %v508
  %v510 = vand.u32 %v19, 4294901760
  %511 = vmatpush1.msra.mxu0 %v510
  %v512 = vand.u32 %v24, 4294901760
  %513 = vmatprep.subr.mxu0 %v512
  %v514 = vand.u32 %v23, 4294901760
  %515 = vmatpush1.msra.mxu0 %v514
  %v516 = vand.u32 %v28, 4294901760
  %517 = vmatprep.subr.mxu0 %v516
  %v518 = vand.u32 %v27, 4294901760
  %519 = vmatpush1.msra.mxu0 %v518
  %520 = vmatprep.subr.mxu0 0.0
  %521 = vmatpush1.msra.mxu0 0.0
  %522 = vmatprep.subr.mxu0 0.0
  %523 = vmatpush1.msra.mxu0 0.0
  %524 = vmatprep.subr.mxu0 0.0
  %525 = vmatpush1.msra.mxu0 0.0
  %526 = vmatprep.subr.mxu0 0.0
  %527 = vmatpush1.msra.mxu0 0.0
  %528 = vmatprep.subr.mxu0 0.0
  %529 = vmatpush1.msra.mxu0 0.0
  %530 = vmatprep.subr.mxu0 0.0
  %531 = vmatpush1.msra.mxu0 0.0
  %532 = vmatprep.subr.mxu0 0.0
  %533 = vmatpush1.msra.mxu0 0.0
  %534 = vmatprep.subr.mxu0 0.0
  %535 = vmatpush1.msra.mxu0 0.0
  %536 = vmatprep.subr.mxu0 0.0
  %537 = vmatpush1.msra.mxu0 0.0
  %538 = vmatprep.subr.mxu0 0.0
  %539 = vmatpush1.msra.mxu0 0.0
  %540 = vmatprep.subr.mxu0 0.0
  %541 = vmatpush1.msra.mxu0 0.0
  %542 = vmatprep.subr.mxu0 0.0
  %543 = vmatpush1.msra.mxu0 0.0
  %544 = vmatprep.subr.mxu0 0.0
  %545 = vmatpush1.msra.mxu0 0.0
  %546 = vmatprep.subr.mxu0 0.0
  %547 = vmatpush1.msra.mxu0 0.0
  %548 = vmatprep.subr.mxu0 0.0
  %549 = vmatpush1.msra.mxu0 0.0
  %550 = vmatprep.subr.mxu0 0.0
  %551 = vmatpush1.msra.mxu0 0.0
  %552 = vmatprep.subr.mxu0 0.0
  %553 = vmatpush1.msra.mxu0 0.0
  %554 = vmatprep.subr.mxu0 0.0
  %555 = vmatpush1.msra.mxu0 0.0
  %556 = vmatprep.subr.mxu0 0.0
  %557 = vmatpush1.msra.mxu0 0.0
  %558 = vmatprep.subr.mxu0 0.0
  %559 = vmatpush1.msra.mxu0 0.0
  %560 = vmatprep.subr.mxu0 0.0
  %561 = vmatpush1.msra.mxu0 0.0
  %562 = vmatprep.subr.mxu0 0.0
  %563 = vmatpush1.msra.mxu0 0.0
  %564 = vmatprep.subr.mxu0 0.0
  %565 = vmatpush1.msra.mxu0 0.0
  %566 = vmatprep.subr.mxu0 0.0
  %567 = vmatpush1.msra.mxu0 0.0
  %568 = vmatprep.subr.mxu0 0.0
  %569 = vmatpush1.msra.mxu0 0.0
  %570 = vmatprep.subr.mxu0 0.0
  %571 = vmatpush1.msra.mxu0 0.0
  %572 = vmatprep.subr.mxu0 0.0
  %573 = vmatpush1.msra.mxu0 0.0
  %574 = vmatprep.subr.mxu0 0.0
  %575 = vmatpush1.msra.mxu0 0.0
  %576 = vmatprep.mubr.f32.mxu0 0.0
  %v577 = vand.u32 %v39, 4294901760
  %578 = vmatmul.mubr.f32.gmra.mrb[0].mxu0 %v577
  %v579 = vpop.f32.mrb[0].mxu0
  %v580 = vadd.f32 %v500, %v579
  %v581 = vpop.f32.mrb[0].mxu0
  %v582 = vadd.f32 %v502, %v581
  %583 = vdwg.mxu0
  %v584 = vand.u32 %v18, 4294901760
  %585 = vmatprep.subr.mxu0 %v584
  %v586 = vand.u32 %v17, 4294901760
  %587 = vmatpush1.msra.mxu0 %v586
  %v588 = vand.u32 %v22, 4294901760
  %589 = vmatprep.subr.mxu0 %v588
  %v590 = vand.u32 %v21, 4294901760
  %591 = vmatpush1.msra.mxu0 %v590
  %v592 = vand.u32 %v26, 4294901760
  %593 = vmatprep.subr.mxu0 %v592
  %v594 = vand.u32 %v25, 4294901760
  %595 = vmatpush1.msra.mxu0 %v594
  %v596 = vand.u32 %v30, 4294901760
  %597 = vmatprep.subr.mxu0 %v596
  %v598 = vand.u32 %v29, 4294901760
  %599 = vmatpush1.msra.mxu0 %v598
  %600 = vmatprep.subr.mxu0 0.0
  %601 = vmatpush1.msra.mxu0 0.0
  %602 = vmatprep.subr.mxu0 0.0
  %603 = vmatpush1.msra.mxu0 0.0
  %604 = vmatprep.subr.mxu0 0.0
  %605 = vmatpush1.msra.mxu0 0.0
  %606 = vmatprep.subr.mxu0 0.0
  %607 = vmatpush1.msra.mxu0 0.0
  %608 = vmatprep.subr.mxu0 0.0
  %609 = vmatpush1.msra.mxu0 0.0
  %610 = vmatprep.subr.mxu0 0.0
  %611 = vmatpush1.msra.mxu0 0.0
  %612 = vmatprep.subr.mxu0 0.0
  %613 = vmatpush1.msra.mxu0 0.0
  %614 = vmatprep.subr.mxu0 0.0
  %615 = vmatpush1.msra.mxu0 0.0
  %616 = vmatprep.subr.mxu0 0.0
  %617 = vmatpush1.msra.mxu0 0.0
  %618 = vmatprep.subr.mxu0 0.0
  %619 = vmatpush1.msra.mxu0 0.0
  %620 = vmatprep.subr.mxu0 0.0
  %621 = vmatpush1.msra.mxu0 0.0
  %622 = vmatprep.subr.mxu0 0.0
  %623 = vmatpush1.msra.mxu0 0.0
  %624 = vmatprep.subr.mxu0 0.0
  %625 = vmatpush1.msra.mxu0 0.0
  %626 = vmatprep.subr.mxu0 0.0
  %627 = vmatpush1.msra.mxu0 0.0
  %628 = vmatprep.subr.mxu0 0.0
  %629 = vmatpush1.msra.mxu0 0.0
  %630 = vmatprep.subr.mxu0 0.0
  %631 = vmatpush1.msra.mxu0 0.0
  %632 = vmatprep.subr.mxu0 0.0
  %633 = vmatpush1.msra.mxu0 0.0
  %634 = vmatprep.subr.mxu0 0.0
  %635 = vmatpush1.msra.mxu0 0.0
  %636 = vmatprep.subr.mxu0 0.0
  %637 = vmatpush1.msra.mxu0 0.0
  %638 = vmatprep.subr.mxu0 0.0
  %639 = vmatpush1.msra.mxu0 0.0
  %640 = vmatprep.subr.mxu0 0.0
  %641 = vmatpush1.msra.mxu0 0.0
  %642 = vmatprep.subr.mxu0 0.0
  %643 = vmatpush1.msra.mxu0 0.0
  %644 = vmatprep.subr.mxu0 0.0
  %645 = vmatpush1.msra.mxu0 0.0
  %646 = vmatprep.subr.mxu0 0.0
  %647 = vmatpush1.msra.mxu0 0.0
  %648 = vmatprep.subr.mxu0 0.0
  %649 = vmatpush1.msra.mxu0 0.0
  %650 = vmatprep.subr.mxu0 0.0
  %651 = vmatpush1.msra.mxu0 0.0
  %652 = vmatprep.subr.mxu0 0.0
  %653 = vmatpush1.msra.mxu0 0.0
  %654 = vmatprep.subr.mxu0 0.0
  %655 = vmatpush1.msra.mxu0 0.0
  %656 = vmatprep.mubr.f32.mxu0 0.0
  %v657 = vand.u32 %v39, 4294901760
  %v658 = vsub.f32 %v39, %v657
  %v659 = vand.u32 %v658, 4294901760
  %v660 = vsub.f32 %v658, %v659
  %v661 = vand.u32 %v660, 4294901760
  %662 = vmatmul.mubr.f32.gmra.mrb[0].mxu0 %v661
  %v663 = vpop.f32.mrb[0].mxu0
  %v664 = vadd.f32 %v35, %v663
  %v665 = vpop.f32.mrb[0].mxu0
  %v666 = vadd.f32 %v35, %v665
  %667 = vdwg.mxu0
  %v668 = vand.u32 %v18, 4294901760
  %v669 = vsub.f32 %v18, %v668
  %v670 = vand.u32 %v669, 4294901760
  %v671 = vsub.f32 %v669, %v670
  %v672 = vand.u32 %v671, 4294901760
  %673 = vmatprep.subr.mxu0 %v672
  %v674 = vand.u32 %v17, 4294901760
  %v675 = vsub.f32 %v17, %v674
  %v676 = vand.u32 %v675, 4294901760
  %v677 = vsub.f32 %v675, %v676
  %v678 = vand.u32 %v677, 4294901760
  %679 = vmatpush1.msra.mxu0 %v678
  %v680 = vand.u32 %v22, 4294901760
  %v681 = vsub.f32 %v22, %v680
  %v682 = vand.u32 %v681, 4294901760
  %v683 = vsub.f32 %v681, %v682
  %v684 = vand.u32 %v683, 4294901760
  %685 = vmatprep.subr.mxu0 %v684
  %v686 = vand.u32 %v21, 4294901760
  %v687 = vsub.f32 %v21, %v686
  %v688 = vand.u32 %v687, 4294901760
  %v689 = vsub.f32 %v687, %v688
  %v690 = vand.u32 %v689, 4294901760
  %691 = vmatpush1.msra.mxu0 %v690
  %v692 = vand.u32 %v26, 4294901760
  %v693 = vsub.f32 %v26, %v692
  %v694 = vand.u32 %v693, 4294901760
  %v695 = vsub.f32 %v693, %v694
  %v696 = vand.u32 %v695, 4294901760
  %697 = vmatprep.subr.mxu0 %v696
  %v698 = vand.u32 %v25, 4294901760
  %v699 = vsub.f32 %v25, %v698
  %v700 = vand.u32 %v699, 4294901760
  %v701 = vsub.f32 %v699, %v700
  %v702 = vand.u32 %v701, 4294901760
  %703 = vmatpush1.msra.mxu0 %v702
  %v704 = vand.u32 %v30, 4294901760
  %v705 = vsub.f32 %v30, %v704
  %v706 = vand.u32 %v705, 4294901760
  %v707 = vsub.f32 %v705, %v706
  %v708 = vand.u32 %v707, 4294901760
  %709 = vmatprep.subr.mxu0 %v708
  %v710 = vand.u32 %v29, 4294901760
  %v711 = vsub.f32 %v29, %v710
  %v712 = vand.u32 %v711, 4294901760
  %v713 = vsub.f32 %v711, %v712
  %v714 = vand.u32 %v713, 4294901760
  %715 = vmatpush1.msra.mxu0 %v714
  %716 = vmatprep.subr.mxu0 0.0
  %717 = vmatpush1.msra.mxu0 0.0
  %718 = vmatprep.subr.mxu0 0.0
  %719 = vmatpush1.msra.mxu0 0.0
  %720 = vmatprep.subr.mxu0 0.0
  %721 = vmatpush1.msra.mxu0 0.0
  %722 = vmatprep.subr.mxu0 0.0
  %723 = vmatpush1.msra.mxu0 0.0
  %724 = vmatprep.subr.mxu0 0.0
  %725 = vmatpush1.msra.mxu0 0.0
  %726 = vmatprep.subr.mxu0 0.0
  %727 = vmatpush1.msra.mxu0 0.0
  %728 = vmatprep.subr.mxu0 0.0
  %729 = vmatpush1.msra.mxu0 0.0
  %730 = vmatprep.subr.mxu0 0.0
  %731 = vmatpush1.msra.mxu0 0.0
  %732 = vmatprep.subr.mxu0 0.0
  %733 = vmatpush1.msra.mxu0 0.0
  %734 = vmatprep.subr.mxu0 0.0
  %735 = vmatpush1.msra.mxu0 0.0
  %736 = vmatprep.subr.mxu0 0.0
  %737 = vmatpush1.msra.mxu0 0.0
  %738 = vmatprep.subr.mxu0 0.0
  %739 = vmatpush1.msra.mxu0 0.0
  %740 = vmatprep.subr.mxu0 0.0
  %741 = vmatpush1.msra.mxu0 0.0
  %742 = vmatprep.subr.mxu0 0.0
  %743 = vmatpush1.msra.mxu0 0.0
  %744 = vmatprep.subr.mxu0 0.0
  %745 = vmatpush1.msra.mxu0 0.0
  %746 = vmatprep.subr.mxu0 0.0
  %747 = vmatpush1.msra.mxu0 0.0
  %748 = vmatprep.subr.mxu0 0.0
  %749 = vmatpush1.msra.mxu0 0.0
  %750 = vmatprep.subr.mxu0 0.0
  %751 = vmatpush1.msra.mxu0 0.0
  %752 = vmatprep.subr.mxu0 0.0
  %753 = vmatpush1.msra.mxu0 0.0
  %754 = vmatprep.subr.mxu0 0.0
  %755 = vmatpush1.msra.mxu0 0.0
  %756 = vmatprep.subr.mxu0 0.0
  %757 = vmatpush1.msra.mxu0 0.0
  %758 = vmatprep.subr.mxu0 0.0
  %759 = vmatpush1.msra.mxu0 0.0
  %760 = vmatprep.subr.mxu0 0.0
  %761 = vmatpush1.msra.mxu0 0.0
  %762 = vmatprep.subr.mxu0 0.0
  %763 = vmatpush1.msra.mxu0 0.0
  %764 = vmatprep.subr.mxu0 0.0
  %765 = vmatpush1.msra.mxu0 0.0
  %766 = vmatprep.subr.mxu0 0.0
  %767 = vmatpush1.msra.mxu0 0.0
  %768 = vmatprep.subr.mxu0 0.0
  %769 = vmatpush1.msra.mxu0 0.0
  %770 = vmatprep.subr.mxu0 0.0
  %771 = vmatpush1.msra.mxu0 0.0
  %772 = vmatprep.mubr.f32.mxu0 0.0
  %v773 = vand.u32 %v39, 4294901760
  %774 = vmatmul.mubr.f32.gmra.mrb[0].mxu0 %v773
  %v775 = vpop.f32.mrb[0].mxu0
  %v776 = vadd.f32 %v664, %v775
  %v777 = vpop.f32.mrb[0].mxu0
  %v778 = vadd.f32 %v666, %v777
  %779 = vdwg.mxu0
  %v780 = vand.u32 %v18, 4294901760
  %v781 = vsub.f32 %v18, %v780
  %782 = vmatprep.subr.mxu0 %v781
  %v783 = vand.u32 %v17, 4294901760
  %v784 = vsub.f32 %v17, %v783
  %785 = vmatpush1.msra.mxu0 %v784
  %v786 = vand.u32 %v22, 4294901760
  %v787 = vsub.f32 %v22, %v786
  %788 = vmatprep.subr.mxu0 %v787
  %v789 = vand.u32 %v21, 4294901760
  %v790 = vsub.f32 %v21, %v789
  %791 = vmatpush1.msra.mxu0 %v790
  %v792 = vand.u32 %v26, 4294901760
  %v793 = vsub.f32 %v26, %v792
  %794 = vmatprep.subr.mxu0 %v793
  %v795 = vand.u32 %v25, 4294901760
  %v796 = vsub.f32 %v25, %v795
  %797 = vmatpush1.msra.mxu0 %v796
  %v798 = vand.u32 %v30, 4294901760
  %v799 = vsub.f32 %v30, %v798
  %800 = vmatprep.subr.mxu0 %v799
  %v801 = vand.u32 %v29, 4294901760
  %v802 = vsub.f32 %v29, %v801
  %803 = vmatpush1.msra.mxu0 %v802
  %804 = vmatprep.subr.mxu0 0.0
  %805 = vmatpush1.msra.mxu0 0.0
  %806 = vmatprep.subr.mxu0 0.0
  %807 = vmatpush1.msra.mxu0 0.0
  %808 = vmatprep.subr.mxu0 0.0
  %809 = vmatpush1.msra.mxu0 0.0
  %810 = vmatprep.subr.mxu0 0.0
  %811 = vmatpush1.msra.mxu0 0.0
  %812 = vmatprep.subr.mxu0 0.0
  %813 = vmatpush1.msra.mxu0 0.0
  %814 = vmatprep.subr.mxu0 0.0
  %815 = vmatpush1.msra.mxu0 0.0
  %816 = vmatprep.subr.mxu0 0.0
  %817 = vmatpush1.msra.mxu0 0.0
  %818 = vmatprep.subr.mxu0 0.0
  %819 = vmatpush1.msra.mxu0 0.0
  %820 = vmatprep.subr.mxu0 0.0
  %821 = vmatpush1.msra.mxu0 0.0
  %822 = vmatprep.subr.mxu0 0.0
  %823 = vmatpush1.msra.mxu0 0.0
  %824 = vmatprep.subr.mxu0 0.0
  %825 = vmatpush1.msra.mxu0 0.0
  %826 = vmatprep.subr.mxu0 0.0
  %827 = vmatpush1.msra.mxu0 0.0
  %828 = vmatprep.subr.mxu0 0.0
  %829 = vmatpush1.msra.mxu0 0.0
  %830 = vmatprep.subr.mxu0 0.0
  %831 = vmatpush1.msra.mxu0 0.0
  %832 = vmatprep.subr.mxu0 0.0
  %833 = vmatpush1.msra.mxu0 0.0
  %834 = vmatprep.subr.mxu0 0.0
  %835 = vmatpush1.msra.mxu0 0.0
  %836 = vmatprep.subr.mxu0 0.0
  %837 = vmatpush1.msra.mxu0 0.0
  %838 = vmatprep.subr.mxu0 0.0
  %839 = vmatpush1.msra.mxu0 0.0
  %840 = vmatprep.subr.mxu0 0.0
  %841 = vmatpush1.msra.mxu0 0.0
  %842 = vmatprep.subr.mxu0 0.0
  %843 = vmatpush1.msra.mxu0 0.0
  %844 = vmatprep.subr.mxu0 0.0
  %845 = vmatpush1.msra.mxu0 0.0
  %846 = vmatprep.subr.mxu0 0.0
  %847 = vmatpush1.msra.mxu0 0.0
  %848 = vmatprep.subr.mxu0 0.0
  %849 = vmatpush1.msra.mxu0 0.0
  %850 = vmatprep.subr.mxu0 0.0
  %851 = vmatpush1.msra.mxu0 0.0
  %852 = vmatprep.subr.mxu0 0.0
  %853 = vmatpush1.msra.mxu0 0.0
  %854 = vmatprep.subr.mxu0 0.0
  %855 = vmatpush1.msra.mxu0 0.0
  %856 = vmatprep.subr.mxu0 0.0
  %857 = vmatpush1.msra.mxu0 0.0
  %858 = vmatprep.subr.mxu0 0.0
  %859 = vmatpush1.msra.mxu0 0.0
  %860 = vmatprep.mubr.f32.mxu0 0.0
  %v861 = vand.u32 %v39, 4294901760
  %v862 = vsub.f32 %v39, %v861
  %863 = vmatmul.mubr.f32.gmra.mrb[0].mxu0 %v862
  %v864 = vpop.f32.mrb[0].mxu0
  %v865 = vadd.f32 %v776, %v864
  %v866 = vpop.f32.mrb[0].mxu0
  %v867 = vadd.f32 %v778, %v866
  %868 = vdwg.mxu0
  %v869 = vand.u32 %v18, 4294901760
  %870 = vmatprep.subr.mxu0 %v869
  %v871 = vand.u32 %v17, 4294901760
  %872 = vmatpush1.msra.mxu0 %v871
  %v873 = vand.u32 %v22, 4294901760
  %874 = vmatprep.subr.mxu0 %v873
  %v875 = vand.u32 %v21, 4294901760
  %876 = vmatpush1.msra.mxu0 %v875
  %v877 = vand.u32 %v26, 4294901760
  %878 = vmatprep.subr.mxu0 %v877
  %v879 = vand.u32 %v25, 4294901760
  %880 = vmatpush1.msra.mxu0 %v879
  %v881 = vand.u32 %v30, 4294901760
  %882 = vmatprep.subr.mxu0 %v881
  %v883 = vand.u32 %v29, 4294901760
  %884 = vmatpush1.msra.mxu0 %v883
  %885 = vmatprep.subr.mxu0 0.0
  %886 = vmatpush1.msra.mxu0 0.0
  %887 = vmatprep.subr.mxu0 0.0
  %888 = vmatpush1.msra.mxu0 0.0
  %889 = vmatprep.subr.mxu0 0.0
  %890 = vmatpush1.msra.mxu0 0.0
  %891 = vmatprep.subr.mxu0 0.0
  %892 = vmatpush1.msra.mxu0 0.0
  %893 = vmatprep.subr.mxu0 0.0
  %894 = vmatpush1.msra.mxu0 0.0
  %895 = vmatprep.subr.mxu0 0.0
  %896 = vmatpush1.msra.mxu0 0.0
  %897 = vmatprep.subr.mxu0 0.0
  %898 = vmatpush1.msra.mxu0 0.0
  %899 = vmatprep.subr.mxu0 0.0
  %900 = vmatpush1.msra.mxu0 0.0
  %901 = vmatprep.subr.mxu0 0.0
  %902 = vmatpush1.msra.mxu0 0.0
  %903 = vmatprep.subr.mxu0 0.0
  %904 = vmatpush1.msra.mxu0 0.0
  %905 = vmatprep.subr.mxu0 0.0
  %906 = vmatpush1.msra.mxu0 0.0
  %907 = vmatprep.subr.mxu0 0.0
  %908 = vmatpush1.msra.mxu0 0.0
  %909 = vmatprep.subr.mxu0 0.0
  %910 = vmatpush1.msra.mxu0 0.0
  %911 = vmatprep.subr.mxu0 0.0
  %912 = vmatpush1.msra.mxu0 0.0
  %913 = vmatprep.subr.mxu0 0.0
  %914 = vmatpush1.msra.mxu0 0.0
  %915 = vmatprep.subr.mxu0 0.0
  %916 = vmatpush1.msra.mxu0 0.0
  %917 = vmatprep.subr.mxu0 0.0
  %918 = vmatpush1.msra.mxu0 0.0
  %919 = vmatprep.subr.mxu0 0.0
  %920 = vmatpush1.msra.mxu0 0.0
  %921 = vmatprep.subr.mxu0 0.0
  %922 = vmatpush1.msra.mxu0 0.0
  %923 = vmatprep.subr.mxu0 0.0
  %924 = vmatpush1.msra.mxu0 0.0
  %925 = vmatprep.subr.mxu0 0.0
  %926 = vmatpush1.msra.mxu0 0.0
  %927 = vmatprep.subr.mxu0 0.0
  %928 = vmatpush1.msra.mxu0 0.0
  %929 = vmatprep.subr.mxu0 0.0
  %930 = vmatpush1.msra.mxu0 0.0
  %931 = vmatprep.subr.mxu0 0.0
  %932 = vmatpush1.msra.mxu0 0.0
  %933 = vmatprep.subr.mxu0 0.0
  %934 = vmatpush1.msra.mxu0 0.0
  %935 = vmatprep.subr.mxu0 0.0
  %936 = vmatpush1.msra.mxu0 0.0
  %937 = vmatprep.subr.mxu0 0.0
  %938 = vmatpush1.msra.mxu0 0.0
  %939 = vmatprep.subr.mxu0 0.0
  %940 = vmatpush1.msra.mxu0 0.0
  %941 = vmatprep.mubr.f32.mxu0 0.0
  %v942 = vand.u32 %v39, 4294901760
  %v943 = vsub.f32 %v39, %v942
  %v944 = vand.u32 %v943, 4294901760
  %945 = vmatmul.mubr.f32.gmra.mrb[0].mxu0 %v944
  %v946 = vpop.f32.mrb[0].mxu0
  %v947 = vadd.f32 %v865, %v946
  %v948 = vpop.f32.mrb[0].mxu0
  %v949 = vadd.f32 %v867, %v948
  %950 = vdwg.mxu0
  %v951 = vand.u32 %v18, 4294901760
  %v952 = vsub.f32 %v18, %v951
  %v953 = vand.u32 %v952, 4294901760
  %954 = vmatprep.subr.mxu0 %v953
  %v955 = vand.u32 %v17, 4294901760
  %v956 = vsub.f32 %v17, %v955
  %v957 = vand.u32 %v956, 4294901760
  %958 = vmatpush1.msra.mxu0 %v957
  %v959 = vand.u32 %v22, 4294901760
  %v960 = vsub.f32 %v22, %v959
  %v961 = vand.u32 %v960, 4294901760
  %962 = vmatprep.subr.mxu0 %v961
  %v963 = vand.u32 %v21, 4294901760
  %v964 = vsub.f32 %v21, %v963
  %v965 = vand.u32 %v964, 4294901760
  %966 = vmatpush1.msra.mxu0 %v965
  %v967 = vand.u32 %v26, 4294901760
  %v968 = vsub.f32 %v26, %v967
  %v969 = vand.u32 %v968, 4294901760
  %970 = vmatprep.subr.mxu0 %v969
  %v971 = vand.u32 %v25, 4294901760
  %v972 = vsub.f32 %v25, %v971
  %v973 = vand.u32 %v972, 4294901760
  %974 = vmatpush1.msra.mxu0 %v973
  %v975 = vand.u32 %v30, 4294901760
  %v976 = vsub.f32 %v30, %v975
  %v977 = vand.u32 %v976, 4294901760
  %978 = vmatprep.subr.mxu0 %v977
  %v979 = vand.u32 %v29, 4294901760
  %v980 = vsub.f32 %v29, %v979
  %v981 = vand.u32 %v980, 4294901760
  %982 = vmatpush1.msra.mxu0 %v981
  %983 = vmatprep.subr.mxu0 0.0
  %984 = vmatpush1.msra.mxu0 0.0
  %985 = vmatprep.subr.mxu0 0.0
  %986 = vmatpush1.msra.mxu0 0.0
  %987 = vmatprep.subr.mxu0 0.0
  %988 = vmatpush1.msra.mxu0 0.0
  %989 = vmatprep.subr.mxu0 0.0
  %990 = vmatpush1.msra.mxu0 0.0
  %991 = vmatprep.subr.mxu0 0.0
  %992 = vmatpush1.msra.mxu0 0.0
  %993 = vmatprep.subr.mxu0 0.0
  %994 = vmatpush1.msra.mxu0 0.0
  %995 = vmatprep.subr.mxu0 0.0
  %996 = vmatpush1.msra.mxu0 0.0
  %997 = vmatprep.subr.mxu0 0.0
  %998 = vmatpush1.msra.mxu0 0.0
  %999 = vmatprep.subr.mxu0 0.0
  %1000 = vmatpush1.msra.mxu0 0.0
  %1001 = vmatprep.subr.mxu0 0.0
  %1002 = vmatpush1.msra.mxu0 0.0
  %1003 = vmatprep.subr.mxu0 0.0
  %1004 = vmatpush1.msra.mxu0 0.0
  %1005 = vmatprep.subr.mxu0 0.0
  %1006 = vmatpush1.msra.mxu0 0.0
  %1007 = vmatprep.subr.mxu0 0.0
  %1008 = vmatpush1.msra.mxu0 0.0
  %1009 = vmatprep.subr.mxu0 0.0
  %1010 = vmatpush1.msra.mxu0 0.0
  %1011 = vmatprep.subr.mxu0 0.0
  %1012 = vmatpush1.msra.mxu0 0.0
  %1013 = vmatprep.subr.mxu0 0.0
  %1014 = vmatpush1.msra.mxu0 0.0
  %1015 = vmatprep.subr.mxu0 0.0
  %1016 = vmatpush1.msra.mxu0 0.0
  %1017 = vmatprep.subr.mxu0 0.0
  %1018 = vmatpush1.msra.mxu0 0.0
  %1019 = vmatprep.subr.mxu0 0.0
  %1020 = vmatpush1.msra.mxu0 0.0
  %1021 = vmatprep.subr.mxu0 0.0
  %1022 = vmatpush1.msra.mxu0 0.0
  %1023 = vmatprep.subr.mxu0 0.0
  %1024 = vmatpush1.msra.mxu0 0.0
  %1025 = vmatprep.subr.mxu0 0.0
  %1026 = vmatpush1.msra.mxu0 0.0
  %1027 = vmatprep.subr.mxu0 0.0
  %1028 = vmatpush1.msra.mxu0 0.0
  %1029 = vmatprep.subr.mxu0 0.0
  %1030 = vmatpush1.msra.mxu0 0.0
  %1031 = vmatprep.subr.mxu0 0.0
  %1032 = vmatpush1.msra.mxu0 0.0
  %1033 = vmatprep.subr.mxu0 0.0
  %1034 = vmatpush1.msra.mxu0 0.0
  %1035 = vmatprep.subr.mxu0 0.0
  %1036 = vmatpush1.msra.mxu0 0.0
  %1037 = vmatprep.subr.mxu0 0.0
  %1038 = vmatpush1.msra.mxu0 0.0
  %1039 = vmatprep.mubr.f32.mxu0 0.0
  %v1040 = vand.u32 %v39, 4294901760
  %1041 = vmatmul.mubr.f32.gmra.mrb[0].mxu0 %v1040
  %v1042 = vpop.f32.mrb[0].mxu0
  %v1043 = vadd.f32 %v947, %v1042
  %v1044 = vpop.f32.mrb[0].mxu0
  %v1045 = vadd.f32 %v949, %v1044
  %1046 = vdwg.mxu0
  %v1047 = vand.u32 %v18, 4294901760
  %1048 = vmatprep.subr.mxu0 %v1047
  %v1049 = vand.u32 %v17, 4294901760
  %1050 = vmatpush1.msra.mxu0 %v1049
  %v1051 = vand.u32 %v22, 4294901760
  %1052 = vmatprep.subr.mxu0 %v1051
  %v1053 = vand.u32 %v21, 4294901760
  %1054 = vmatpush1.msra.mxu0 %v1053
  %v1055 = vand.u32 %v26, 4294901760
  %1056 = vmatprep.subr.mxu0 %v1055
  %v1057 = vand.u32 %v25, 4294901760
  %1058 = vmatpush1.msra.mxu0 %v1057
  %v1059 = vand.u32 %v30, 4294901760
  %1060 = vmatprep.subr.mxu0 %v1059
  %v1061 = vand.u32 %v29, 4294901760
  %1062 = vmatpush1.msra.mxu0 %v1061
  %1063 = vmatprep.subr.mxu0 0.0
  %1064 = vmatpush1.msra.mxu0 0.0
  %1065 = vmatprep.subr.mxu0 0.0
  %1066 = vmatpush1.msra.mxu0 0.0
  %1067 = vmatprep.subr.mxu0 0.0
  %1068 = vmatpush1.msra.mxu0 0.0
  %1069 = vmatprep.subr.mxu0 0.0
  %1070 = vmatpush1.msra.mxu0 0.0
  %1071 = vmatprep.subr.mxu0 0.0
  %1072 = vmatpush1.msra.mxu0 0.0
  %1073 = vmatprep.subr.mxu0 0.0
  %1074 = vmatpush1.msra.mxu0 0.0
  %1075 = vmatprep.subr.mxu0 0.0
  %1076 = vmatpush1.msra.mxu0 0.0
  %1077 = vmatprep.subr.mxu0 0.0
  %1078 = vmatpush1.msra.mxu0 0.0
  %1079 = vmatprep.subr.mxu0 0.0
  %1080 = vmatpush1.msra.mxu0 0.0
  %1081 = vmatprep.subr.mxu0 0.0
  %1082 = vmatpush1.msra.mxu0 0.0
  %1083 = vmatprep.subr.mxu0 0.0
  %1084 = vmatpush1.msra.mxu0 0.0
  %1085 = vmatprep.subr.mxu0 0.0
  %1086 = vmatpush1.msra.mxu0 0.0
  %1087 = vmatprep.subr.mxu0 0.0
  %1088 = vmatpush1.msra.mxu0 0.0
  %1089 = vmatprep.subr.mxu0 0.0
  %1090 = vmatpush1.msra.mxu0 0.0
  %1091 = vmatprep.subr.mxu0 0.0
  %1092 = vmatpush1.msra.mxu0 0.0
  %1093 = vmatprep.subr.mxu0 0.0
  %1094 = vmatpush1.msra.mxu0 0.0
  %1095 = vmatprep.subr.mxu0 0.0
  %1096 = vmatpush1.msra.mxu0 0.0
  %1097 = vmatprep.subr.mxu0 0.0
  %1098 = vmatpush1.msra.mxu0 0.0
  %1099 = vmatprep.subr.mxu0 0.0
  %1100 = vmatpush1.msra.mxu0 0.0
  %1101 = vmatprep.subr.mxu0 0.0
  %1102 = vmatpush1.msra.mxu0 0.0
  %1103 = vmatprep.subr.mxu0 0.0
  %1104 = vmatpush1.msra.mxu0 0.0
  %1105 = vmatprep.subr.mxu0 0.0
  %1106 = vmatpush1.msra.mxu0 0.0
  %1107 = vmatprep.subr.mxu0 0.0
  %1108 = vmatpush1.msra.mxu0 0.0
  %1109 = vmatprep.subr.mxu0 0.0
  %1110 = vmatpush1.msra.mxu0 0.0
  %1111 = vmatprep.subr.mxu0 0.0
  %1112 = vmatpush1.msra.mxu0 0.0
  %1113 = vmatprep.subr.mxu0 0.0
  %1114 = vmatpush1.msra.mxu0 0.0
  %1115 = vmatprep.subr.mxu0 0.0
  %1116 = vmatpush1.msra.mxu0 0.0
  %1117 = vmatprep.subr.mxu0 0.0
  %1118 = vmatpush1.msra.mxu0 0.0
  %1119 = vmatprep.mubr.f32.mxu0 0.0
  %v1120 = vand.u32 %v39, 4294901760
  %1121 = vmatmul.mubr.f32.gmra.mrb[0].mxu0 %v1120
  %v1122 = vpop.f32.mrb[0].mxu0
  %v1123 = vadd.f32 %v1043, %v1122
  %v1124 = vpop.f32.mrb[0].mxu0
  %v1125 = vadd.f32 %v1045, %v1124
  %1126 = vdwg.mxu0
  %1127 = vst [vmem:[%s3] sm:$0xff] %v580
  %1128 = vst [vmem:[%s3 + $0x8] sm:$0xff] %v582
  %1129 = vst [vmem:[%s3 + $0x10] sm:$0xff] %v1123
  %1130 = vst [vmem:[%s3 + $0x18] sm:$0xff] %v1125
  // Predicated region
  $region14: #{conv2d_pallas.1} parent=0 // pred_check
    _
  $region15: #{conv2d_pallas.1} parent=0 // pred_check_branch
    %1132 = sbr.rel (0) target = $region17
  $region16: #{conv2d_pallas.1} parent=0 // pred_region
    _
  $region17: #{conv2d_pallas.1} parent=0 // pred_fallthru
    _
  // Predicated region
  $region18: #{conv2d_pallas.1} parent=0 // pred_check
    _
  $region19: #{conv2d_pallas.1} parent=0 // pred_check_branch
    %1134 = sbr.rel (0) target = $region21
  $region20: #{conv2d_pallas.1} parent=0 // pred_region
    _
  $region21: #{conv2d_pallas.1} parent=0 // pred_fallthru
    _

</llo_original>
